<compile_context>
chip_gen: v6e
topology: v6e:2x2x1
jax: 0.10.0
libtpu: 0.0.40
codegen_flags: <defaults>
</compile_context>

<pallas_src>
import functools

import jax
import jax.numpy as jnp
import numpy as np
from jax import lax
from jax.experimental import pallas as pl
from jax.experimental.pallas import tpu as pltpu


def _round_up(x, m):
    return (x + m - 1) // m * m


def _aligned_divisor(n, align, cap):
    """Largest multiple of `align` that divides n and is <= cap, else None."""
    best = None
    t = align
    while t <= min(n, cap):
        if n % t == 0:
            best = t
        t += align
    return best


# --------------------------------------------------------------------------
# Pallas kernel: one (tm, tn) output tile of  (x @ W.T) * scale + b
# Grid = (N-tiles, M-tiles, K-tiles); output block is the f32 accumulator
# (its index_map is constant along the innermost K axis).
# --------------------------------------------------------------------------
def ws_linear_kernel(x_ref, w_ref, b_ref, o_ref, *, scale):
    k = pl.program_id(2)

    @pl.when(k == 0)
    def _():
        o_ref[...] = jnp.zeros_like(o_ref)

    xs = x_ref[...].astype(jnp.bfloat16)      # (tm, tk) activations
    ws = w_ref[...].astype(jnp.bfloat16)      # (tn, tk) weight; no-op if bf16
    # Contract K with the weight in its native (N, K) layout (trans_b).
    o_ref[...] += lax.dot_general(
        xs, ws,
        dimension_numbers=(((1,), (1,)), ((), ())),
        preferred_element_type=jnp.float32)

    @pl.when(k == pl.num_programs(2) - 1)
    def _():
        o_ref[...] = o_ref[...] * scale + b_ref[...]


def ws_linear(x, weight, bias, *, tm_max=256, tn_max=256, tk_max=2048):
    """PyTorch WSLinear forward: (x * sqrt(2/in_features)) @ weight.T + bias.

    `weight` is used as-is in (out_features, in_features) layout; storing it
    in bf16 (converted once at init) halves its HBM traffic.
    """
    B, K = x.shape
    N, Kw = weight.shape
    assert Kw == K
    scale = float((2.0 / K) ** 0.5)

    # ---- M (batch rows): whole batch as one block when small (no padding,
    # full-dim blocks are exempt from the (8,128) rule); else tiles of tm_max.
    if B <= tm_max:
        tm, Mp = B, B
    else:
        tm = tm_max
        Mp = _round_up(B, tm)

    # ---- N (out_features): lane dim of the output.  tn <= tn_max keeps the
    # N axis split at StyleGAN widths (both v7x TensorCores get work, and the
    # weight tile stays small); fall back to full N when 128 doesn't divide it.
    tn = _aligned_divisor(N, 128, tn_max) or N

    # ---- K (in_features): VMEM-resident when cheap, otherwise blocked so
    # double-buffered tiles stay well under the scoped-VMEM limit (v7x-safe).
    if K * (tm + tn) * 4 <= 4 * 1024 * 1024:
        tk = K
    else:
        tk = _aligned_divisor(K, 128, tk_max) or K
        # TODO(synk): if K is both huge and not a multiple of 128, pad K once
        # at init time instead of falling back to a fully resident K block.

    # Only pad x rows when the batch actually exceeds one tile.
    xp = x if Mp == B else jnp.zeros((Mp, K), x.dtype).at[:B].set(x)
    b2 = bias.reshape(1, N)

    grid = (N // tn, Mp // tm, K // tk)
    kernel = functools.partial(ws_linear_kernel, scale=scale)
    out = pl.pallas_call(
        kernel,
        out_shape=jax.ShapeDtypeStruct((Mp, N), jnp.float32),
        grid=grid,
        in_specs=[
            pl.BlockSpec((tm, tk), lambda j, i, k: (i, k)),   # x row-tile
            pl.BlockSpec((tn, tk), lambda j, i, k: (j, k)),   # W (N,K) as-is
            pl.BlockSpec((1, tn), lambda j, i, k: (0, j)),    # bias tile
        ],
        out_specs=pl.BlockSpec((tm, tn), lambda j, i, k: (i, j)),
        compiler_params=pltpu.CompilerParams(
            dimension_semantics=("parallel", "parallel", "arbitrary")),
    )(xp, weight, b2)
    return out if Mp == B else out[:B]


# --------------------------------------------------------------------------
# Pure-JAX f32 reference (PyTorch semantics)
# --------------------------------------------------------------------------
def ref_ws_linear(x, weight, bias):
    scale = (2.0 / x.shape[1]) ** 0.5
    return jnp.dot(x * scale, weight.T,
                   precision=jax.lax.Precision.HIGHEST) + bias[None, :]


if __name__ == "__main__":
    key = jax.random.PRNGKey(0)
    kx, kw, kb, kx2, kw2, kb2 = jax.random.split(key, 6)

    # ---- Small shape matching the module defaults -------------------------
    B, in_features, out_features = 2, 32, 64
    x = jax.random.normal(kx, (B, in_features), jnp.float32)
    weight_f32 = jax.random.normal(kw, (out_features, in_features), jnp.float32)
    bias = jnp.zeros((out_features,), jnp.float32)          # module init: zeros

    # Parameter-init-time conversion (done once, NOT per call): bf16 weight in
    # HBM halves weight DMA bytes; accumulation stays f32 inside the kernel.
    weight = weight_f32.astype(jnp.bfloat16)

    out = jax.block_until_ready(ws_linear(x, weight, bias))
    assert out.shape == (B, out_features)
    np.testing.assert_allclose(np.asarray(out),
                               np.asarray(ref_ws_linear(x, weight_f32, bias)),
                               rtol=2e-2, atol=2e-2)

    # Non-zero bias (forward must handle arbitrary bias values).
    bias_nz = jax.random.normal(kb, (out_features,), jnp.float32)
    out_nz = jax.block_until_ready(ws_linear(x, weight, bias_nz))
    np.testing.assert_allclose(np.asarray(out_nz),
                               np.asarray(ref_ws_linear(x, weight_f32, bias_nz)),
                               rtol=2e-2, atol=2e-2)

    # ---- StyleGAN-mapping-like shape: exercises the N-tiled (tn=256) path --
    B2, K2, N2 = 4, 512, 512
    x2 = jax.random.normal(kx2, (B2, K2), jnp.float32)
    w2_f32 = jax.random.normal(kw2, (N2, K2), jnp.float32)
    b2 = jax.random.normal(kb2, (N2,), jnp.float32)
    out2 = jax.block_until_ready(ws_linear(x2, w2_f32.astype(jnp.bfloat16), b2))
    np.testing.assert_allclose(np.asarray(out2),
                               np.asarray(ref_ws_linear(x2, w2_f32, b2)),
                               rtol=2e-2, atol=2e-2)

    print("KERNEL_OK")
</pallas_src>

<mosaic_0001>
module attributes {stable_mosaic.version = 11 : i64} {
  func.func @ws_linear_kernel(%arg0: i32, %arg1: i32, %arg2: i32, %arg3: memref<2x32xf32, #tpu.memory_space<vmem>>, %arg4: memref<64x32xbf16, #tpu.memory_space<vmem>>, %arg5: memref<1x64xf32, #tpu.memory_space<vmem>>, %arg6: memref<2x64xf32, #tpu.memory_space<vmem>>) attributes {dimension_semantics = [#tpu.dimension_semantics<parallel>, #tpu.dimension_semantics<parallel>, #tpu.dimension_semantics<arbitrary>], iteration_bounds = array<i64: 1, 1, 1>, scalar_prefetch = 0 : i64, scratch_operands = 0 : i64, tpu.core_type = #tpu.core_type<tc>, window_params = [{transform_indices = @transform_0, window_bounds = array<i64: 2, 32>}, {transform_indices = @transform_1, window_bounds = array<i64: 64, 32>}, {transform_indices = @transform_2, window_bounds = array<i64: 1, 64>}, {transform_indices = @transform_3, window_bounds = array<i64: 2, 64>}]} {
    %c0_i32 = arith.constant 0 : i32
    %0 = arith.cmpi eq, %arg2, %c0_i32 : i32
    %1 = arith.extui %0 : i1 to i32
    %c0_i32_0 = arith.constant 0 : i32
    %2 = arith.cmpi ne, %1, %c0_i32_0 : i32
    scf.if %2 {
      %cst_10 = arith.constant 0.000000e+00 : f32
      %13 = vector.broadcast %cst_10 : f32 to vector<2x64xf32>
      %c0_11 = arith.constant 0 : index
      %c0_12 = arith.constant 0 : index
      %14 = vector.load %arg6[%c0_11, %c0_12] : memref<2x64xf32, #tpu.memory_space<vmem>>, vector<2x64xf32>
      tpu.vector_store %arg6[%c0_11, %c0_12], %13 {strides = array<i32>} : memref<2x64xf32, #tpu.memory_space<vmem>>, vector<2x64xf32>,
    } else {
    }
    %c0 = arith.constant 0 : index
    %c0_1 = arith.constant 0 : index
    %3 = vector.load %arg3[%c0, %c0_1] : memref<2x32xf32, #tpu.memory_space<vmem>>, vector<2x32xf32>
    %4 = arith.truncf %3 : vector<2x32xf32> to vector<2x32xbf16>
    %c0_2 = arith.constant 0 : index
    %c0_3 = arith.constant 0 : index
    %5 = vector.load %arg4[%c0_2, %c0_3] : memref<64x32xbf16, #tpu.memory_space<vmem>>, vector<64x32xbf16>
    %c0_4 = arith.constant 0 : index
    %c0_5 = arith.constant 0 : index
    %6 = vector.load %arg6[%c0_4, %c0_5] : memref<2x64xf32, #tpu.memory_space<vmem>>, vector<2x64xf32>
    %cst = arith.constant dense<0.000000e+00> : vector<2x64xf32>
    %7 = tpu.matmul %4, %5, %cst {dimension_numbers = #tpu.dot_dimension_numbers<[1], [1], [0], [0], [0, 0, 1, 0], [], []>} : vector<2x32xbf16>, vector<64x32xbf16>, vector<2x64xf32> -> vector<2x64xf32>
    %8 = arith.addf %6, %7 : vector<2x64xf32>
    %c0_6 = arith.constant 0 : index
    %c0_7 = arith.constant 0 : index
    %9 = vector.load %arg6[%c0_6, %c0_7] : memref<2x64xf32, #tpu.memory_space<vmem>>, vector<2x64xf32>
    tpu.vector_store %arg6[%c0_6, %c0_7], %8 {strides = array<i32>} : memref<2x64xf32, #tpu.memory_space<vmem>>, vector<2x64xf32>,
    %c0_i32_8 = arith.constant 0 : i32
    %10 = arith.cmpi eq, %arg2, %c0_i32_8 : i32
    %11 = arith.extui %10 : i1 to i32
    %c0_i32_9 = arith.constant 0 : i32
    %12 = arith.cmpi ne, %11, %c0_i32_9 : i32
    scf.if %12 {
      %c0_10 = arith.constant 0 : index
      %c0_11 = arith.constant 0 : index
      %13 = vector.load %arg6[%c0_10, %c0_11] : memref<2x64xf32, #tpu.memory_space<vmem>>, vector<2x64xf32>
      %cst_12 = arith.constant 2.500000e-01 : f32
      %14 = vector.broadcast %cst_12 : f32 to vector<2x64xf32>
      %15 = arith.mulf %13, %14 : vector<2x64xf32>
      %c0_13 = arith.constant 0 : index
      %c0_14 = arith.constant 0 : index
      %16 = vector.load %arg5[%c0_13, %c0_14] : memref<1x64xf32, #tpu.memory_space<vmem>>, vector<1x64xf32>
      %17 = vector.broadcast %16 : vector<1x64xf32> to vector<2x64xf32>
      %18 = arith.addf %15, %17 : vector<2x64xf32>
      %c0_15 = arith.constant 0 : index
      %c0_16 = arith.constant 0 : index
      %19 = vector.load %arg6[%c0_15, %c0_16] : memref<2x64xf32, #tpu.memory_space<vmem>>, vector<2x64xf32>
      tpu.vector_store %arg6[%c0_15, %c0_16], %18 {strides = array<i32>} : memref<2x64xf32, #tpu.memory_space<vmem>>, vector<2x64xf32>,
    } else {
    }
    return
  }
  func.func @transform_0(%arg0: i32, %arg1: i32, %arg2: i32) -> (i32, i32) {
    %c0_i32 = arith.constant 0 : i32
    return %arg1, %arg2 : i32, i32
  }
  func.func @transform_1(%arg0: i32, %arg1: i32, %arg2: i32) -> (i32, i32) {
    %c0_i32 = arith.constant 0 : i32
    return %arg0, %arg2 : i32, i32
  }
  func.func @transform_2(%arg0: i32, %arg1: i32, %arg2: i32) -> (i32, i32) {
    %c0_i32 = arith.constant 0 : i32
    %c0_i32_0 = arith.constant 0 : i32
    return %c0_i32, %arg0 : i32, i32
  }
  func.func @transform_3(%arg0: i32, %arg1: i32, %arg2: i32) -> (i32, i32) {
    %c0_i32 = arith.constant 0 : i32
    return %arg1, %arg0 : i32, i32
  }
}

</mosaic_0001>

<llo_original>
// kernel: tpu_custom_call.1
$region0: #{tpu_custom_call.1}
  #allocation0 [shape = 'u32[]', space=smem, size = 0x4, offset = 0x4, fixed_abs, tag = 'smem constant byte address 0x4 - core index']
  #allocation1 [shape = 'u32[144,128]{1,0:T(1,128)}', space=vmem, size = 0x12000, scoped, tag = 'internal scratch']
  %s0 = inlined_call_operand.vmem [shape: f32[2,32], index: 0, kind: input, shape index: {}]
  %s1 = inlined_call_operand.vmem [shape: bf16[64,32], index: 1, kind: input, shape index: {}]
  %s2 = inlined_call_operand.vmem [shape: f32[1,64], index: 2, kind: input, shape index: {}]
  %s3 = inlined_call_operand.hbm [shape: f32[2,64], index: 3, kind: output, shape index: {}]
  %s4 = sld [smem:[#allocation0]]
  $region30: #{tpu_custom_call.1} parent=0
    _
  %s6 = ssub.s32 1, %s4
  %s7 = scalar_select 0, %s6, %s4
  $region1: #{tpu_custom_call.1} parent=0
    #allocation2 [shape = 'u8[1024]{0}', space=vmem, size = 0x400, scoped, tag = 'output window, operand 0, single buffered']
    #allocation3 [shape = 's32[1]{0}', space=sflag, size = 0x4, scoped, tag = 'scoped memory for tpu_custom_call.1']
    %8 = vsyncpa [#allocation3], 0
    // Predicated region
    $region2: #{tpu_custom_call.1} parent=1 // pred_check
      _
    $region3: #{tpu_custom_call.1} parent=1 // pred_check_branch
      %10 = sbr.rel (0) target = $region5
    $region4: #{tpu_custom_call.1} parent=1 // pred_region
      _
    $region5: #{tpu_custom_call.1} parent=1 // pred_fallthru
      _
    // Predicated region
    $region6: #{tpu_custom_call.1} parent=1 // pred_check
      _
    $region7: #{tpu_custom_call.1} parent=1 // pred_check_branch
      %12 = sbr.rel (0) target = $region9
    $region8: #{tpu_custom_call.1} parent=1 // pred_region
      _
    $region9: #{tpu_custom_call.1} parent=1 // pred_fallthru
      _
    // Predicated region
    $region10: #{tpu_custom_call.1} parent=1 // pred_check
      _
    $region11: #{tpu_custom_call.1} parent=1 // pred_check_branch
      %14 = sbr.rel (0) target = $region13
    $region12: #{tpu_custom_call.1} parent=1 // pred_region
      _
    $region13: #{tpu_custom_call.1} parent=1 // pred_fallthru
      _
    %p16 = scmp.eq.s32.totalorder 0, 0
    // Predicated region
    $region14: #{tpu_custom_call.1} parent=1 // pred_check
      %p17 = pneg %p16
    $region15: #{tpu_custom_call.1} parent=1 // pred_check_branch
      %19 = sbr.rel (%p17) target = $region17
    $region16: #{tpu_custom_call.1} parent=1 // pred_region
      %vm20 = vcmask 517120
      %21 = vst.msk [vmem:[#allocation2] sm:$0x3] %vm20, 0.0
    $region17: #{tpu_custom_call.1} parent=1 // pred_fallthru
      _
    %v22 = vld [vmem:[%s0] sm:$0x3]
    %v23 = vpack.c.bf16 %v22, %v22
    %v24 = vld [vmem:[%s1] sm:$0xf]
    %v25 = vld [vmem:[%s1 + $0x4] sm:$0xf]
    %v26 = vld [vmem:[%s1 + $0x8] sm:$0xf]
    %v27 = vld [vmem:[%s1 + $0xc] sm:$0xf]
    %v28 = vld [vmem:[%s1 + $0x10] sm:$0xf]
    %v29 = vld [vmem:[%s1 + $0x14] sm:$0xf]
    %v30 = vld [vmem:[%s1 + $0x18] sm:$0xf]
    %v31 = vld [vmem:[%s1 + $0x1c] sm:$0xf]
    %v32 = vld [vmem:[#allocation2] sm:$0x3]
    %v41 = vunpack.c.l.b16 %v24
    %v42 = vunpack.c.l.b16 %v25
    %v43 = vunpack.c.l.b16 %v26
    %v44 = vunpack.c.l.b16 %v27
    %v45 = vunpack.c.l.b16 %v28
    %v46 = vunpack.c.l.b16 %v29
    %v47 = vunpack.c.l.b16 %v30
    %v48 = vunpack.c.l.b16 %v31
    %v49 = vpack.c.b16 %v42, %v41
    %v50 = vpack.c.b16 %v44, %v43
    %v51 = vpack.c.b16 %v46, %v45
    %v52 = vpack.c.b16 %v48, %v47
    %vm53 = vcmask 261120
    %v55 = vsel %vm53, %v23, 0
    %v58 = vsel %vm53, %v49, 0
    %v61 = vsel %vm53, %v50, 0
    %v64 = vsel %vm53, %v51, 0
    %v67 = vsel %vm53, %v52, 0
    %69 = vmatprep.subr.bf16.mxu0 0
    %70 = vmatpush1.bf16.xpose.msra.mxu0 0
    %71 = vmatprep.subr.bf16.mxu0 0
    %72 = vmatpush1.bf16.xpose.msra.mxu0 0
    %73 = vmatprep.subr.bf16.mxu0 0
    %74 = vmatpush1.bf16.xpose.msra.mxu0 0
    %75 = vmatprep.subr.bf16.mxu0 0
    %76 = vmatpush1.bf16.xpose.msra.mxu0 0
    %77 = vmatprep.subr.bf16.mxu0 0
    %78 = vmatpush1.bf16.xpose.msra.mxu0 %v67
    %79 = vmatprep.subr.bf16.mxu0 0
    %80 = vmatpush1.bf16.xpose.msra.mxu0 %v64
    %81 = vmatprep.subr.bf16.mxu0 0
    %82 = vmatpush1.bf16.xpose.msra.mxu0 %v61
    %83 = vmatprep.subr.bf16.mxu0 0
    %84 = vmatpush1.bf16.xpose.msra.mxu0 %v58
    %85 = vmatprep.subr.bf16.mxu0 0
    %86 = vmatpush2.bf16.xpose.msra.mxu0 0
    %87 = vmatprep.subr.bf16.mxu0 0
    %88 = vmatpush2.bf16.xpose.msra.mxu0 0
    %89 = vmatprep.subr.bf16.mxu0 0
    %90 = vmatpush2.bf16.xpose.msra.mxu0 0
    %91 = vmatprep.subr.bf16.mxu0 0
    %92 = vmatpush2.bf16.xpose.msra.mxu0 0
    %93 = vmatprep.subr.bf16.mxu0 0
    %94 = vmatpush2.bf16.xpose.msra.mxu0 0
    %95 = vmatprep.subr.bf16.mxu0 0
    %96 = vmatpush2.bf16.xpose.msra.mxu0 0
    %97 = vmatprep.subr.bf16.mxu0 0
    %98 = vmatpush2.bf16.xpose.msra.mxu0 0
    %99 = vmatprep.subr.bf16.mxu0 0
    %100 = vmatpush2.bf16.xpose.msra.mxu0 0
    %101 = vmatprep.mubr.bf16.mxu0 0
    %102 = vmatmul.mubr.bf16.gmra.mxu0 %v55
    %v103 = vpop.f32.mrf.mxu0
    %v104 = vadd.f32 0.0, %v103
    %v105 = vpop.f32.mrf.mxu0
    %v106 = vpop.f32.mrf.mxu0
    %v107 = vpop.f32.mrf.mxu0
    %108 = vdwg.mxu0
    %v109 = vadd.f32 %v32, %v104
    %vm110 = vcmask 517120
    %111 = vst.msk [vmem:[#allocation2] sm:$0x3] %vm110, %v109
    // Predicated region
    $region18: #{tpu_custom_call.1} parent=1 // pred_check
      %p112 = pneg %p16
    $region19: #{tpu_custom_call.1} parent=1 // pred_check_branch
      %114 = sbr.rel (%p112) target = $region21
    $region20: #{tpu_custom_call.1} parent=1 // pred_region
      %v115 = vld [vmem:[#allocation2] sm:$0x3]
      %v116 = vmul.f32 %v115, 0.25
      %v117 = vld [vmem:[%s2] sm:$0x1]
      %v119 = vlaneseq
      %v120 = vshrl.u32 %v119, 7
      %v121 = vsub.s32 0, %v120
      %v122 = vrot.slane %v117, %v121
      %v124 = vadd.f32 %v116, %v122
      %125 = vst.msk [vmem:[#allocation2] sm:$0x3] %vm110, %v124
    $region21: #{tpu_custom_call.1} parent=1 // pred_fallthru
      _
    // Predicated region
    $region22: #{tpu_custom_call.1} parent=1 // pred_check
      _
    $region23: #{tpu_custom_call.1} parent=1 // pred_check_branch
      %127 = sbr.rel (0) target = $region25
    $region24: #{tpu_custom_call.1} parent=1 // pred_region
      %s129 = ssub.s32 32, 32
      %130 = vsyncadd [#allocation3], %s129
      %s132 = sshll.u32 [#allocation2], 4
      %s133 = int_to_ptr.vmem [resolvable:$true] %s132
      %135 = dma.vmem_to_hbm [thread:$0]  %s133, 32, %s3, [#allocation3]
    $region25: #{tpu_custom_call.1} parent=1 // pred_fallthru
      _
    // Predicated region
    $region26: #{tpu_custom_call.1} parent=1 // pred_check
      _
    $region27: #{tpu_custom_call.1} parent=1 // pred_check_branch
      %137 = sbr.rel (0) target = $region29
    $region28: #{tpu_custom_call.1} parent=1 // pred_region
      %138 = dma.done [#allocation3], 32
    $region29: #{tpu_custom_call.1} parent=1 // pred_fallthru
      _
    %139 = vsyncpa [#allocation3], 1

</llo_original>
